<compile_context>
chip_gen: v7x
topology: tpu7x:2x2x1
jax: 0.10.0
libtpu: 0.0.40
codegen_flags: <defaults>
</compile_context>

<pallas_src>
import functools

import jax
import jax.numpy as jnp
from jax.experimental import pallas as pl
from jax.experimental.pallas import tpu as pltpu

_LANE = 128
_MIN_TILE_B = 8 * _LANE      # 1024: keeps the batch-sublane block dim a multiple of 8
_MAX_TILE_B = 32768          # ~1.2 MiB / input block (f32): fits v5e/v6e/v7x comfortably


def _fcnet_kernel(x_ref, w1_ref, b1_ref, w2_ref, b2_ref, w3_ref, b3_ref, o_ref):
    """One batch tile of the fused 9->3->4->C MLP.

    x_ref : (9, TB//128, 128) f32 VMEM  -- batch spread over sublane+lane (dense vregs)
    w*_ref: (out, in)         f32 SMEM  -- scalar weights, resident across the grid
    b*_ref: (out,)            f32 SMEM
    o_ref : (C, TB//128, 128) f32 VMEM
    """

    def dense_relu(get_row, w_ref, b_ref):
        n_out, n_in = w_ref.shape
        out_rows = []
        for o in range(n_out):
            acc = get_row(0) * w_ref[o, 0]
            for k in range(1, n_in):
                acc = acc + get_row(k) * w_ref[o, k]
            out_rows.append(jnp.maximum(acc + b_ref[o], 0.0))
        return out_rows

    # Layer 1: stream the 9 feature rows straight out of VMEM per output row
    # (cheap vld slots) instead of keeping 9 tile-wide values live in vregs.
    h1 = dense_relu(lambda k: x_ref[k, :, :], w1_ref, b1_ref)   # 3 rows
    h2 = dense_relu(lambda k: h1[k], w2_ref, b2_ref)            # 4 rows
    h3 = dense_relu(lambda k: h2[k], w3_ref, b3_ref)            # C rows
    for o, row in enumerate(h3):
        o_ref[o, :, :] = row


@functools.partial(jax.jit, static_argnames=("max_tile_b",))
def fcnet_forward(x, params, *, max_tile_b=_MAX_TILE_B):
    """x: any shape (B, ...) that flattens to (B, 9). Returns (B, num_classes) f32."""
    b = x.shape[0]
    x2d = x.reshape(b, -1).astype(jnp.float32)        # == x.view(B, -1)
    assert x2d.shape[1] == 9, "FCNet expects 9 flattened input features"
    w1, b1, w2, b2, w3, b3 = params
    c = w3.shape[0]

    # Largest tile (multiple of 1024) up to max_tile_b; pad batch up to it.
    tile_b = min(max_tile_b, -(-b // _MIN_TILE_B) * _MIN_TILE_B)
    bp = -(-b // tile_b) * tile_b
    tile_rows = tile_b // _LANE
    grid = (bp // tile_b,)

    # Lane-dense layout: features leading, padded batch over (sublane, lane).
    # (pad/transpose/reshape and the final un-transpose fuse under jit.)
    xp = jnp.pad(x2d, ((0, bp - b), (0, 0)))
    xt = xp.T.reshape(9, bp // _LANE, _LANE)

    smem_specs = [pl.BlockSpec(memory_space=pltpu.MemorySpace.SMEM) for _ in range(6)]
    flops = 2 * bp * (9 * 3 + 3 * 4 + 4 * c)
    bytes_accessed = 4 * (bp * (9 + c) + (9 * 3 + 3 * 4 + 4 * c) + (3 + 4 + c))

    out = pl.pallas_call(
        _fcnet_kernel,
        out_shape=jax.ShapeDtypeStruct((c, bp // _LANE, _LANE), jnp.float32),
        grid=grid,
        in_specs=[pl.BlockSpec((9, tile_rows, _LANE), lambda i: (0, i, 0))] + smem_specs,
        out_specs=pl.BlockSpec((c, tile_rows, _LANE), lambda i: (0, i, 0)),
        compiler_params=pltpu.CompilerParams(
            dimension_semantics=("parallel",),
            vmem_limit_bytes=32 * 1024 * 1024,
        ),
        cost_estimate=pl.CostEstimate(
            flops=flops, transcendentals=0, bytes_accessed=bytes_accessed
        ),
    )(xt, w1, b1, w2, b2, w3, b3)

    # (C, Bp/128, 128) -> (Bp, C) -> slice off the batch padding.
    return out.reshape(c, bp).T[:b]


def init_fcnet_params(key, num_classes):
    """nn.Linear-style init; weights stored PyTorch-style as (out_features, in_features)."""
    dims = [(9, 3), (3, 4), (4, num_classes)]
    params = []
    for fan_in, fan_out in dims:
        key, kw, kb = jax.random.split(key, 3)
        bound = 1.0 / (fan_in ** 0.5)
        w = jax.random.uniform(kw, (fan_out, fan_in), jnp.float32, -bound, bound)
        bias = jax.random.uniform(kb, (fan_out,), jnp.float32, -bound, bound)
        params += [w, bias]
    return tuple(params)


def fcnet_reference(x, params):
    """Pure-JAX reference (matches the PyTorch forward, ReLU after every layer)."""
    b = x.shape[0]
    h = x.reshape(b, -1).astype(jnp.float32)
    w1, b1, w2, b2, w3, b3 = params
    h = jnp.maximum(h @ w1.T + b1, 0.0)
    h = jnp.maximum(h @ w2.T + b2, 0.0)
    h = jnp.maximum(h @ w3.T + b3, 0.0)
    return h


if __name__ == "__main__":
    key = jax.random.PRNGKey(0)
    k_params, k_x, k_x2 = jax.random.split(key, 3)

    num_classes = 5
    params = init_fcnet_params(k_params, num_classes)

    # NCHW-like input that flattens to (B, 9), as the PyTorch module receives.
    x = jax.random.normal(k_x, (2, 1, 3, 3), jnp.float32)
    out = jax.block_until_ready(fcnet_forward(x, params))
    ref = fcnet_reference(x, params)
    assert out.shape == (2, num_classes)
    assert jnp.allclose(out, ref, atol=1e-5, rtol=1e-5)

    # Also exercise the multi-tile grid path (small shapes, tiny tile for testing).
    xb = jax.random.normal(k_x2, (2500, 9), jnp.float32)
    outb = jax.block_until_ready(fcnet_forward(xb, params, max_tile_b=1024))
    refb = fcnet_reference(xb, params)
    assert outb.shape == (2500, num_classes)
    assert jnp.allclose(outb, refb, atol=1e-5, rtol=1e-5)

    print("KERNEL_OK")
</pallas_src>

<mosaic_0001>
module attributes {stable_mosaic.version = 11 : i64} {
  func.func @_fcnet_kernel(%arg0: i32, %arg1: memref<9x8x128xf32, #tpu.memory_space<vmem>>, %arg2: memref<3x9xf32, #tpu.memory_space<smem>>, %arg3: memref<3xf32, #tpu.memory_space<smem>>, %arg4: memref<4x3xf32, #tpu.memory_space<smem>>, %arg5: memref<4xf32, #tpu.memory_space<smem>>, %arg6: memref<5x4xf32, #tpu.memory_space<smem>>, %arg7: memref<5xf32, #tpu.memory_space<smem>>, %arg8: memref<5x8x128xf32, #tpu.memory_space<vmem>>) attributes {dimension_semantics = [#tpu.dimension_semantics<parallel>], iteration_bounds = array<i64: 1>, scalar_prefetch = 0 : i64, scratch_operands = 0 : i64, tpu.core_type = #tpu.core_type<tc>, window_params = [{transform_indices = @transform_0, window_bounds = array<i64: 9, 8, 128>}, {transform_indices = @transform_1, window_bounds = array<i64: 3, 9>}, {transform_indices = @transform_2, window_bounds = array<i64: 3>}, {transform_indices = @transform_3, window_bounds = array<i64: 4, 3>}, {transform_indices = @transform_4, window_bounds = array<i64: 4>}, {transform_indices = @transform_5, window_bounds = array<i64: 5, 4>}, {transform_indices = @transform_6, window_bounds = array<i64: 5>}, {transform_indices = @transform_7, window_bounds = array<i64: 5, 8, 128>}]} {
    %c0 = arith.constant 0 : index
    %c0_0 = arith.constant 0 : index
    %c0_1 = arith.constant 0 : index
    %0 = vector.load %arg1[%c0, %c0_0, %c0_1] : memref<9x8x128xf32, #tpu.memory_space<vmem>>, vector<1x8x128xf32>
    %1 = vector.shape_cast %0 : vector<1x8x128xf32> to vector<8x128xf32>
    %c0_2 = arith.constant 0 : index
    %c0_3 = arith.constant 0 : index
    %2 = memref.load %arg2[%c0_2, %c0_3] : memref<3x9xf32, #tpu.memory_space<smem>>
    %3 = vector.broadcast %2 : f32 to vector<8x128xf32>
    %4 = arith.mulf %1, %3 : vector<8x128xf32>
    %c1 = arith.constant 1 : index
    %c0_4 = arith.constant 0 : index
    %c0_5 = arith.constant 0 : index
    %5 = vector.load %arg1[%c1, %c0_4, %c0_5] : memref<9x8x128xf32, #tpu.memory_space<vmem>>, vector<1x8x128xf32>
    %6 = vector.shape_cast %5 : vector<1x8x128xf32> to vector<8x128xf32>
    %c0_6 = arith.constant 0 : index
    %c1_7 = arith.constant 1 : index
    %7 = memref.load %arg2[%c0_6, %c1_7] : memref<3x9xf32, #tpu.memory_space<smem>>
    %8 = vector.broadcast %7 : f32 to vector<8x128xf32>
    %9 = arith.mulf %6, %8 : vector<8x128xf32>
    %10 = arith.addf %4, %9 : vector<8x128xf32>
    %c2 = arith.constant 2 : index
    %c0_8 = arith.constant 0 : index
    %c0_9 = arith.constant 0 : index
    %11 = vector.load %arg1[%c2, %c0_8, %c0_9] : memref<9x8x128xf32, #tpu.memory_space<vmem>>, vector<1x8x128xf32>
    %12 = vector.shape_cast %11 : vector<1x8x128xf32> to vector<8x128xf32>
    %c0_10 = arith.constant 0 : index
    %c2_11 = arith.constant 2 : index
    %13 = memref.load %arg2[%c0_10, %c2_11] : memref<3x9xf32, #tpu.memory_space<smem>>
    %14 = vector.broadcast %13 : f32 to vector<8x128xf32>
    %15 = arith.mulf %12, %14 : vector<8x128xf32>
    %16 = arith.addf %10, %15 : vector<8x128xf32>
    %c3 = arith.constant 3 : index
    %c0_12 = arith.constant 0 : index
    %c0_13 = arith.constant 0 : index
    %17 = vector.load %arg1[%c3, %c0_12, %c0_13] : memref<9x8x128xf32, #tpu.memory_space<vmem>>, vector<1x8x128xf32>
    %18 = vector.shape_cast %17 : vector<1x8x128xf32> to vector<8x128xf32>
    %c0_14 = arith.constant 0 : index
    %c3_15 = arith.constant 3 : index
    %19 = memref.load %arg2[%c0_14, %c3_15] : memref<3x9xf32, #tpu.memory_space<smem>>
    %20 = vector.broadcast %19 : f32 to vector<8x128xf32>
    %21 = arith.mulf %18, %20 : vector<8x128xf32>
    %22 = arith.addf %16, %21 : vector<8x128xf32>
    %c4 = arith.constant 4 : index
    %c0_16 = arith.constant 0 : index
    %c0_17 = arith.constant 0 : index
    %23 = vector.load %arg1[%c4, %c0_16, %c0_17] : memref<9x8x128xf32, #tpu.memory_space<vmem>>, vector<1x8x128xf32>
    %24 = vector.shape_cast %23 : vector<1x8x128xf32> to vector<8x128xf32>
    %c0_18 = arith.constant 0 : index
    %c4_19 = arith.constant 4 : index
    %25 = memref.load %arg2[%c0_18, %c4_19] : memref<3x9xf32, #tpu.memory_space<smem>>
    %26 = vector.broadcast %25 : f32 to vector<8x128xf32>
    %27 = arith.mulf %24, %26 : vector<8x128xf32>
    %28 = arith.addf %22, %27 : vector<8x128xf32>
    %c5 = arith.constant 5 : index
    %c0_20 = arith.constant 0 : index
    %c0_21 = arith.constant 0 : index
    %29 = vector.load %arg1[%c5, %c0_20, %c0_21] : memref<9x8x128xf32, #tpu.memory_space<vmem>>, vector<1x8x128xf32>
    %30 = vector.shape_cast %29 : vector<1x8x128xf32> to vector<8x128xf32>
    %c0_22 = arith.constant 0 : index
    %c5_23 = arith.constant 5 : index
    %31 = memref.load %arg2[%c0_22, %c5_23] : memref<3x9xf32, #tpu.memory_space<smem>>
    %32 = vector.broadcast %31 : f32 to vector<8x128xf32>
    %33 = arith.mulf %30, %32 : vector<8x128xf32>
    %34 = arith.addf %28, %33 : vector<8x128xf32>
    %c6 = arith.constant 6 : index
    %c0_24 = arith.constant 0 : index
    %c0_25 = arith.constant 0 : index
    %35 = vector.load %arg1[%c6, %c0_24, %c0_25] : memref<9x8x128xf32, #tpu.memory_space<vmem>>, vector<1x8x128xf32>
    %36 = vector.shape_cast %35 : vector<1x8x128xf32> to vector<8x128xf32>
    %c0_26 = arith.constant 0 : index
    %c6_27 = arith.constant 6 : index
    %37 = memref.load %arg2[%c0_26, %c6_27] : memref<3x9xf32, #tpu.memory_space<smem>>
    %38 = vector.broadcast %37 : f32 to vector<8x128xf32>
    %39 = arith.mulf %36, %38 : vector<8x128xf32>
    %40 = arith.addf %34, %39 : vector<8x128xf32>
    %c7 = arith.constant 7 : index
    %c0_28 = arith.constant 0 : index
    %c0_29 = arith.constant 0 : index
    %41 = vector.load %arg1[%c7, %c0_28, %c0_29] : memref<9x8x128xf32, #tpu.memory_space<vmem>>, vector<1x8x128xf32>
    %42 = vector.shape_cast %41 : vector<1x8x128xf32> to vector<8x128xf32>
    %c0_30 = arith.constant 0 : index
    %c7_31 = arith.constant 7 : index
    %43 = memref.load %arg2[%c0_30, %c7_31] : memref<3x9xf32, #tpu.memory_space<smem>>
    %44 = vector.broadcast %43 : f32 to vector<8x128xf32>
    %45 = arith.mulf %42, %44 : vector<8x128xf32>
    %46 = arith.addf %40, %45 : vector<8x128xf32>
    %c8 = arith.constant 8 : index
    %c0_32 = arith.constant 0 : index
    %c0_33 = arith.constant 0 : index
    %47 = vector.load %arg1[%c8, %c0_32, %c0_33] : memref<9x8x128xf32, #tpu.memory_space<vmem>>, vector<1x8x128xf32>
    %48 = vector.shape_cast %47 : vector<1x8x128xf32> to vector<8x128xf32>
    %c0_34 = arith.constant 0 : index
    %c8_35 = arith.constant 8 : index
    %49 = memref.load %arg2[%c0_34, %c8_35] : memref<3x9xf32, #tpu.memory_space<smem>>
    %50 = vector.broadcast %49 : f32 to vector<8x128xf32>
    %51 = arith.mulf %48, %50 : vector<8x128xf32>
    %52 = arith.addf %46, %51 : vector<8x128xf32>
    %c0_36 = arith.constant 0 : index
    %53 = memref.load %arg3[%c0_36] : memref<3xf32, #tpu.memory_space<smem>>
    %54 = vector.broadcast %53 : f32 to vector<8x128xf32>
    %55 = arith.addf %52, %54 : vector<8x128xf32>
    %cst = arith.constant 0.000000e+00 : f32
    %56 = vector.broadcast %cst : f32 to vector<8x128xf32>
    %57 = arith.maximumf %55, %56 : vector<8x128xf32>
    %c0_37 = arith.constant 0 : index
    %c0_38 = arith.constant 0 : index
    %c0_39 = arith.constant 0 : index
    %58 = vector.load %arg1[%c0_37, %c0_38, %c0_39] : memref<9x8x128xf32, #tpu.memory_space<vmem>>, vector<1x8x128xf32>
    %59 = vector.shape_cast %58 : vector<1x8x128xf32> to vector<8x128xf32>
    %c1_40 = arith.constant 1 : index
    %c0_41 = arith.constant 0 : index
    %60 = memref.load %arg2[%c1_40, %c0_41] : memref<3x9xf32, #tpu.memory_space<smem>>
    %61 = vector.broadcast %60 : f32 to vector<8x128xf32>
    %62 = arith.mulf %59, %61 : vector<8x128xf32>
    %c1_42 = arith.constant 1 : index
    %c0_43 = arith.constant 0 : index
    %c0_44 = arith.constant 0 : index
    %63 = vector.load %arg1[%c1_42, %c0_43, %c0_44] : memref<9x8x128xf32, #tpu.memory_space<vmem>>, vector<1x8x128xf32>
    %64 = vector.shape_cast %63 : vector<1x8x128xf32> to vector<8x128xf32>
    %c1_45 = arith.constant 1 : index
    %c1_46 = arith.constant 1 : index
    %65 = memref.load %arg2[%c1_45, %c1_46] : memref<3x9xf32, #tpu.memory_space<smem>>
    %66 = vector.broadcast %65 : f32 to vector<8x128xf32>
    %67 = arith.mulf %64, %66 : vector<8x128xf32>
    %68 = arith.addf %62, %67 : vector<8x128xf32>
    %c2_47 = arith.constant 2 : index
    %c0_48 = arith.constant 0 : index
    %c0_49 = arith.constant 0 : index
    %69 = vector.load %arg1[%c2_47, %c0_48, %c0_49] : memref<9x8x128xf32, #tpu.memory_space<vmem>>, vector<1x8x128xf32>
    %70 = vector.shape_cast %69 : vector<1x8x128xf32> to vector<8x128xf32>
    %c1_50 = arith.constant 1 : index
    %c2_51 = arith.constant 2 : index
    %71 = memref.load %arg2[%c1_50, %c2_51] : memref<3x9xf32, #tpu.memory_space<smem>>
    %72 = vector.broadcast %71 : f32 to vector<8x128xf32>
    %73 = arith.mulf %70, %72 : vector<8x128xf32>
    %74 = arith.addf %68, %73 : vector<8x128xf32>
    %c3_52 = arith.constant 3 : index
    %c0_53 = arith.constant 0 : index
    %c0_54 = arith.constant 0 : index
    %75 = vector.load %arg1[%c3_52, %c0_53, %c0_54] : memref<9x8x128xf32, #tpu.memory_space<vmem>>, vector<1x8x128xf32>
    %76 = vector.shape_cast %75 : vector<1x8x128xf32> to vector<8x128xf32>
    %c1_55 = arith.constant 1 : index
    %c3_56 = arith.constant 3 : index
    %77 = memref.load %arg2[%c1_55, %c3_56] : memref<3x9xf32, #tpu.memory_space<smem>>
    %78 = vector.broadcast %77 : f32 to vector<8x128xf32>
    %79 = arith.mulf %76, %78 : vector<8x128xf32>
    %80 = arith.addf %74, %79 : vector<8x128xf32>
    %c4_57 = arith.constant 4 : index
    %c0_58 = arith.constant 0 : index
    %c0_59 = arith.constant 0 : index
    %81 = vector.load %arg1[%c4_57, %c0_58, %c0_59] : memref<9x8x128xf32, #tpu.memory_space<vmem>>, vector<1x8x128xf32>
    %82 = vector.shape_cast %81 : vector<1x8x128xf32> to vector<8x128xf32>
    %c1_60 = arith.constant 1 : index
    %c4_61 = arith.constant 4 : index
    %83 = memref.load %arg2[%c1_60, %c4_61] : memref<3x9xf32, #tpu.memory_space<smem>>
    %84 = vector.broadcast %83 : f32 to vector<8x128xf32>
    %85 = arith.mulf %82, %84 : vector<8x128xf32>
    %86 = arith.addf %80, %85 : vector<8x128xf32>
    %c5_62 = arith.constant 5 : index
    %c0_63 = arith.constant 0 : index
    %c0_64 = arith.constant 0 : index
    %87 = vector.load %arg1[%c5_62, %c0_63, %c0_64] : memref<9x8x128xf32, #tpu.memory_space<vmem>>, vector<1x8x128xf32>
    %88 = vector.shape_cast %87 : vector<1x8x128xf32> to vector<8x128xf32>
    %c1_65 = arith.constant 1 : index
    %c5_66 = arith.constant 5 : index
    %89 = memref.load %arg2[%c1_65, %c5_66] : memref<3x9xf32, #tpu.memory_space<smem>>
    %90 = vector.broadcast %89 : f32 to vector<8x128xf32>
    %91 = arith.mulf %88, %90 : vector<8x128xf32>
    %92 = arith.addf %86, %91 : vector<8x128xf32>
    %c6_67 = arith.constant 6 : index
    %c0_68 = arith.constant 0 : index
    %c0_69 = arith.constant 0 : index
    %93 = vector.load %arg1[%c6_67, %c0_68, %c0_69] : memref<9x8x128xf32, #tpu.memory_space<vmem>>, vector<1x8x128xf32>
    %94 = vector.shape_cast %93 : vector<1x8x128xf32> to vector<8x128xf32>
    %c1_70 = arith.constant 1 : index
    %c6_71 = arith.constant 6 : index
    %95 = memref.load %arg2[%c1_70, %c6_71] : memref<3x9xf32, #tpu.memory_space<smem>>
    %96 = vector.broadcast %95 : f32 to vector<8x128xf32>
    %97 = arith.mulf %94, %96 : vector<8x128xf32>
    %98 = arith.addf %92, %97 : vector<8x128xf32>
    %c7_72 = arith.constant 7 : index
    %c0_73 = arith.constant 0 : index
    %c0_74 = arith.constant 0 : index
    %99 = vector.load %arg1[%c7_72, %c0_73, %c0_74] : memref<9x8x128xf32, #tpu.memory_space<vmem>>, vector<1x8x128xf32>
    %100 = vector.shape_cast %99 : vector<1x8x128xf32> to vector<8x128xf32>
    %c1_75 = arith.constant 1 : index
    %c7_76 = arith.constant 7 : index
    %101 = memref.load %arg2[%c1_75, %c7_76] : memref<3x9xf32, #tpu.memory_space<smem>>
    %102 = vector.broadcast %101 : f32 to vector<8x128xf32>
    %103 = arith.mulf %100, %102 : vector<8x128xf32>
    %104 = arith.addf %98, %103 : vector<8x128xf32>
    %c8_77 = arith.constant 8 : index
    %c0_78 = arith.constant 0 : index
    %c0_79 = arith.constant 0 : index
    %105 = vector.load %arg1[%c8_77, %c0_78, %c0_79] : memref<9x8x128xf32, #tpu.memory_space<vmem>>, vector<1x8x128xf32>
    %106 = vector.shape_cast %105 : vector<1x8x128xf32> to vector<8x128xf32>
    %c1_80 = arith.constant 1 : index
    %c8_81 = arith.constant 8 : index
    %107 = memref.load %arg2[%c1_80, %c8_81] : memref<3x9xf32, #tpu.memory_space<smem>>
    %108 = vector.broadcast %107 : f32 to vector<8x128xf32>
    %109 = arith.mulf %106, %108 : vector<8x128xf32>
    %110 = arith.addf %104, %109 : vector<8x128xf32>
    %c1_82 = arith.constant 1 : index
    %111 = memref.load %arg3[%c1_82] : memref<3xf32, #tpu.memory_space<smem>>
    %112 = vector.broadcast %111 : f32 to vector<8x128xf32>
    %113 = arith.addf %110, %112 : vector<8x128xf32>
    %cst_83 = arith.constant 0.000000e+00 : f32
    %114 = vector.broadcast %cst_83 : f32 to vector<8x128xf32>
    %115 = arith.maximumf %113, %114 : vector<8x128xf32>
    %c0_84 = arith.constant 0 : index
    %c0_85 = arith.constant 0 : index
    %c0_86 = arith.constant 0 : index
    %116 = vector.load %arg1[%c0_84, %c0_85, %c0_86] : memref<9x8x128xf32, #tpu.memory_space<vmem>>, vector<1x8x128xf32>
    %117 = vector.shape_cast %116 : vector<1x8x128xf32> to vector<8x128xf32>
    %c2_87 = arith.constant 2 : index
    %c0_88 = arith.constant 0 : index
    %118 = memref.load %arg2[%c2_87, %c0_88] : memref<3x9xf32, #tpu.memory_space<smem>>
    %119 = vector.broadcast %118 : f32 to vector<8x128xf32>
    %120 = arith.mulf %117, %119 : vector<8x128xf32>
    %c1_89 = arith.constant 1 : index
    %c0_90 = arith.constant 0 : index
    %c0_91 = arith.constant 0 : index
    %121 = vector.load %arg1[%c1_89, %c0_90, %c0_91] : memref<9x8x128xf32, #tpu.memory_space<vmem>>, vector<1x8x128xf32>
    %122 = vector.shape_cast %121 : vector<1x8x128xf32> to vector<8x128xf32>
    %c2_92 = arith.constant 2 : index
    %c1_93 = arith.constant 1 : index
    %123 = memref.load %arg2[%c2_92, %c1_93] : memref<3x9xf32, #tpu.memory_space<smem>>
    %124 = vector.broadcast %123 : f32 to vector<8x128xf32>
    %125 = arith.mulf %122, %124 : vector<8x128xf32>
    %126 = arith.addf %120, %125 : vector<8x128xf32>
    %c2_94 = arith.constant 2 : index
    %c0_95 = arith.constant 0 : index
    %c0_96 = arith.constant 0 : index
    %127 = vector.load %arg1[%c2_94, %c0_95, %c0_96] : memref<9x8x128xf32, #tpu.memory_space<vmem>>, vector<1x8x128xf32>
    %128 = vector.shape_cast %127 : vector<1x8x128xf32> to vector<8x128xf32>
    %c2_97 = arith.constant 2 : index
    %c2_98 = arith.constant 2 : index
    %129 = memref.load %arg2[%c2_97, %c2_98] : memref<3x9xf32, #tpu.memory_space<smem>>
    %130 = vector.broadcast %129 : f32 to vector<8x128xf32>
    %131 = arith.mulf %128, %130 : vector<8x128xf32>
    %132 = arith.addf %126, %131 : vector<8x128xf32>
    %c3_99 = arith.constant 3 : index
    %c0_100 = arith.constant 0 : index
    %c0_101 = arith.constant 0 : index
    %133 = vector.load %arg1[%c3_99, %c0_100, %c0_101] : memref<9x8x128xf32, #tpu.memory_space<vmem>>, vector<1x8x128xf32>
    %134 = vector.shape_cast %133 : vector<1x8x128xf32> to vector<8x128xf32>
    %c2_102 = arith.constant 2 : index
    %c3_103 = arith.constant 3 : index
    %135 = memref.load %arg2[%c2_102, %c3_103] : memref<3x9xf32, #tpu.memory_space<smem>>
    %136 = vector.broadcast %135 : f32 to vector<8x128xf32>
    %137 = arith.mulf %134, %136 : vector<8x128xf32>
    %138 = arith.addf %132, %137 : vector<8x128xf32>
    %c4_104 = arith.constant 4 : index
    %c0_105 = arith.constant 0 : index
    %c0_106 = arith.constant 0 : index
    %139 = vector.load %arg1[%c4_104, %c0_105, %c0_106] : memref<9x8x128xf32, #tpu.memory_space<vmem>>, vector<1x8x128xf32>
    %140 = vector.shape_cast %139 : vector<1x8x128xf32> to vector<8x128xf32>
    %c2_107 = arith.constant 2 : index
    %c4_108 = arith.constant 4 : index
    %141 = memref.load %arg2[%c2_107, %c4_108] : memref<3x9xf32, #tpu.memory_space<smem>>
    %142 = vector.broadcast %141 : f32 to vector<8x128xf32>
    %143 = arith.mulf %140, %142 : vector<8x128xf32>
    %144 = arith.addf %138, %143 : vector<8x128xf32>
    %c5_109 = arith.constant 5 : index
    %c0_110 = arith.constant 0 : index
    %c0_111 = arith.constant 0 : index
    %145 = vector.load %arg1[%c5_109, %c0_110, %c0_111] : memref<9x8x128xf32, #tpu.memory_space<vmem>>, vector<1x8x128xf32>
    %146 = vector.shape_cast %145 : vector<1x8x128xf32> to vector<8x128xf32>
    %c2_112 = arith.constant 2 : index
    %c5_113 = arith.constant 5 : index
    %147 = memref.load %arg2[%c2_112, %c5_113] : memref<3x9xf32, #tpu.memory_space<smem>>
    %148 = vector.broadcast %147 : f32 to vector<8x128xf32>
    %149 = arith.mulf %146, %148 : vector<8x128xf32>
    %150 = arith.addf %144, %149 : vector<8x128xf32>
    %c6_114 = arith.constant 6 : index
    %c0_115 = arith.constant 0 : index
    %c0_116 = arith.constant 0 : index
    %151 = vector.load %arg1[%c6_114, %c0_115, %c0_116] : memref<9x8x128xf32, #tpu.memory_space<vmem>>, vector<1x8x128xf32>
    %152 = vector.shape_cast %151 : vector<1x8x128xf32> to vector<8x128xf32>
    %c2_117 = arith.constant 2 : index
    %c6_118 = arith.constant 6 : index
    %153 = memref.load %arg2[%c2_117, %c6_118] : memref<3x9xf32, #tpu.memory_space<smem>>
    %154 = vector.broadcast %153 : f32 to vector<8x128xf32>
    %155 = arith.mulf %152, %154 : vector<8x128xf32>
    %156 = arith.addf %150, %155 : vector<8x128xf32>
    %c7_119 = arith.constant 7 : index
    %c0_120 = arith.constant 0 : index
    %c0_121 = arith.constant 0 : index
    %157 = vector.load %arg1[%c7_119, %c0_120, %c0_121] : memref<9x8x128xf32, #tpu.memory_space<vmem>>, vector<1x8x128xf32>
    %158 = vector.shape_cast %157 : vector<1x8x128xf32> to vector<8x128xf32>
    %c2_122 = arith.constant 2 : index
    %c7_123 = arith.constant 7 : index
    %159 = memref.load %arg2[%c2_122, %c7_123] : memref<3x9xf32, #tpu.memory_space<smem>>
    %160 = vector.broadcast %159 : f32 to vector<8x128xf32>
    %161 = arith.mulf %158, %160 : vector<8x128xf32>
    %162 = arith.addf %156, %161 : vector<8x128xf32>
    %c8_124 = arith.constant 8 : index
    %c0_125 = arith.constant 0 : index
    %c0_126 = arith.constant 0 : index
    %163 = vector.load %arg1[%c8_124, %c0_125, %c0_126] : memref<9x8x128xf32, #tpu.memory_space<vmem>>, vector<1x8x128xf32>
    %164 = vector.shape_cast %163 : vector<1x8x128xf32> to vector<8x128xf32>
    %c2_127 = arith.constant 2 : index
    %c8_128 = arith.constant 8 : index
    %165 = memref.load %arg2[%c2_127, %c8_128] : memref<3x9xf32, #tpu.memory_space<smem>>
    %166 = vector.broadcast %165 : f32 to vector<8x128xf32>
    %167 = arith.mulf %164, %166 : vector<8x128xf32>
    %168 = arith.addf %162, %167 : vector<8x128xf32>
    %c2_129 = arith.constant 2 : index
    %169 = memref.load %arg3[%c2_129] : memref<3xf32, #tpu.memory_space<smem>>
    %170 = vector.broadcast %169 : f32 to vector<8x128xf32>
    %171 = arith.addf %168, %170 : vector<8x128xf32>
    %cst_130 = arith.constant 0.000000e+00 : f32
    %172 = vector.broadcast %cst_130 : f32 to vector<8x128xf32>
    %173 = arith.maximumf %171, %172 : vector<8x128xf32>
    %c0_131 = arith.constant 0 : index
    %c0_132 = arith.constant 0 : index
    %174 = memref.load %arg4[%c0_131, %c0_132] : memref<4x3xf32, #tpu.memory_space<smem>>
    %175 = vector.broadcast %174 : f32 to vector<8x128xf32>
    %176 = arith.mulf %57, %175 : vector<8x128xf32>
    %c0_133 = arith.constant 0 : index
    %c1_134 = arith.constant 1 : index
    %177 = memref.load %arg4[%c0_133, %c1_134] : memref<4x3xf32, #tpu.memory_space<smem>>
    %178 = vector.broadcast %177 : f32 to vector<8x128xf32>
    %179 = arith.mulf %115, %178 : vector<8x128xf32>
    %180 = arith.addf %176, %179 : vector<8x128xf32>
    %c0_135 = arith.constant 0 : index
    %c2_136 = arith.constant 2 : index
    %181 = memref.load %arg4[%c0_135, %c2_136] : memref<4x3xf32, #tpu.memory_space<smem>>
    %182 = vector.broadcast %181 : f32 to vector<8x128xf32>
    %183 = arith.mulf %173, %182 : vector<8x128xf32>
    %184 = arith.addf %180, %183 : vector<8x128xf32>
    %c0_137 = arith.constant 0 : index
    %185 = memref.load %arg5[%c0_137] : memref<4xf32, #tpu.memory_space<smem>>
    %186 = vector.broadcast %185 : f32 to vector<8x128xf32>
    %187 = arith.addf %184, %186 : vector<8x128xf32>
    %cst_138 = arith.constant 0.000000e+00 : f32
    %188 = vector.broadcast %cst_138 : f32 to vector<8x128xf32>
    %189 = arith.maximumf %187, %188 : vector<8x128xf32>
    %c1_139 = arith.constant 1 : index
    %c0_140 = arith.constant 0 : index
    %190 = memref.load %arg4[%c1_139, %c0_140] : memref<4x3xf32, #tpu.memory_space<smem>>
    %191 = vector.broadcast %190 : f32 to vector<8x128xf32>
    %192 = arith.mulf %57, %191 : vector<8x128xf32>
    %c1_141 = arith.constant 1 : index
    %c1_142 = arith.constant 1 : index
    %193 = memref.load %arg4[%c1_141, %c1_142] : memref<4x3xf32, #tpu.memory_space<smem>>
    %194 = vector.broadcast %193 : f32 to vector<8x128xf32>
    %195 = arith.mulf %115, %194 : vector<8x128xf32>
    %196 = arith.addf %192, %195 : vector<8x128xf32>
    %c1_143 = arith.constant 1 : index
    %c2_144 = arith.constant 2 : index
    %197 = memref.load %arg4[%c1_143, %c2_144] : memref<4x3xf32, #tpu.memory_space<smem>>
    %198 = vector.broadcast %197 : f32 to vector<8x128xf32>
    %199 = arith.mulf %173, %198 : vector<8x128xf32>
    %200 = arith.addf %196, %199 : vector<8x128xf32>
    %c1_145 = arith.constant 1 : index
    %201 = memref.load %arg5[%c1_145] : memref<4xf32, #tpu.memory_space<smem>>
    %202 = vector.broadcast %201 : f32 to vector<8x128xf32>
    %203 = arith.addf %200, %202 : vector<8x128xf32>
    %cst_146 = arith.constant 0.000000e+00 : f32
    %204 = vector.broadcast %cst_146 : f32 to vector<8x128xf32>
    %205 = arith.maximumf %203, %204 : vector<8x128xf32>
    %c2_147 = arith.constant 2 : index
    %c0_148 = arith.constant 0 : index
    %206 = memref.load %arg4[%c2_147, %c0_148] : memref<4x3xf32, #tpu.memory_space<smem>>
    %207 = vector.broadcast %206 : f32 to vector<8x128xf32>
    %208 = arith.mulf %57, %207 : vector<8x128xf32>
    %c2_149 = arith.constant 2 : index
    %c1_150 = arith.constant 1 : index
    %209 = memref.load %arg4[%c2_149, %c1_150] : memref<4x3xf32, #tpu.memory_space<smem>>
    %210 = vector.broadcast %209 : f32 to vector<8x128xf32>
    %211 = arith.mulf %115, %210 : vector<8x128xf32>
    %212 = arith.addf %208, %211 : vector<8x128xf32>
    %c2_151 = arith.constant 2 : index
    %c2_152 = arith.constant 2 : index
    %213 = memref.load %arg4[%c2_151, %c2_152] : memref<4x3xf32, #tpu.memory_space<smem>>
    %214 = vector.broadcast %213 : f32 to vector<8x128xf32>
    %215 = arith.mulf %173, %214 : vector<8x128xf32>
    %216 = arith.addf %212, %215 : vector<8x128xf32>
    %c2_153 = arith.constant 2 : index
    %217 = memref.load %arg5[%c2_153] : memref<4xf32, #tpu.memory_space<smem>>
    %218 = vector.broadcast %217 : f32 to vector<8x128xf32>
    %219 = arith.addf %216, %218 : vector<8x128xf32>
    %cst_154 = arith.constant 0.000000e+00 : f32
    %220 = vector.broadcast %cst_154 : f32 to vector<8x128xf32>
    %221 = arith.maximumf %219, %220 : vector<8x128xf32>
    %c3_155 = arith.constant 3 : index
    %c0_156 = arith.constant 0 : index
    %222 = memref.load %arg4[%c3_155, %c0_156] : memref<4x3xf32, #tpu.memory_space<smem>>
    %223 = vector.broadcast %222 : f32 to vector<8x128xf32>
    %224 = arith.mulf %57, %223 : vector<8x128xf32>
    %c3_157 = arith.constant 3 : index
    %c1_158 = arith.constant 1 : index
    %225 = memref.load %arg4[%c3_157, %c1_158] : memref<4x3xf32, #tpu.memory_space<smem>>
    %226 = vector.broadcast %225 : f32 to vector<8x128xf32>
    %227 = arith.mulf %115, %226 : vector<8x128xf32>
    %228 = arith.addf %224, %227 : vector<8x128xf32>
    %c3_159 = arith.constant 3 : index
    %c2_160 = arith.constant 2 : index
    %229 = memref.load %arg4[%c3_159, %c2_160] : memref<4x3xf32, #tpu.memory_space<smem>>
    %230 = vector.broadcast %229 : f32 to vector<8x128xf32>
    %231 = arith.mulf %173, %230 : vector<8x128xf32>
    %232 = arith.addf %228, %231 : vector<8x128xf32>
    %c3_161 = arith.constant 3 : index
    %233 = memref.load %arg5[%c3_161] : memref<4xf32, #tpu.memory_space<smem>>
    %234 = vector.broadcast %233 : f32 to vector<8x128xf32>
    %235 = arith.addf %232, %234 : vector<8x128xf32>
    %cst_162 = arith.constant 0.000000e+00 : f32
    %236 = vector.broadcast %cst_162 : f32 to vector<8x128xf32>
    %237 = arith.maximumf %235, %236 : vector<8x128xf32>
    %c0_163 = arith.constant 0 : index
    %c0_164 = arith.constant 0 : index
    %238 = memref.load %arg6[%c0_163, %c0_164] : memref<5x4xf32, #tpu.memory_space<smem>>
    %239 = vector.broadcast %238 : f32 to vector<8x128xf32>
    %240 = arith.mulf %189, %239 : vector<8x128xf32>
    %c0_165 = arith.constant 0 : index
    %c1_166 = arith.constant 1 : index
    %241 = memref.load %arg6[%c0_165, %c1_166] : memref<5x4xf32, #tpu.memory_space<smem>>
    %242 = vector.broadcast %241 : f32 to vector<8x128xf32>
    %243 = arith.mulf %205, %242 : vector<8x128xf32>
    %244 = arith.addf %240, %243 : vector<8x128xf32>
    %c0_167 = arith.constant 0 : index
    %c2_168 = arith.constant 2 : index
    %245 = memref.load %arg6[%c0_167, %c2_168] : memref<5x4xf32, #tpu.memory_space<smem>>
    %246 = vector.broadcast %245 : f32 to vector<8x128xf32>
    %247 = arith.mulf %221, %246 : vector<8x128xf32>
    %248 = arith.addf %244, %247 : vector<8x128xf32>
    %c0_169 = arith.constant 0 : index
    %c3_170 = arith.constant 3 : index
    %249 = memref.load %arg6[%c0_169, %c3_170] : memref<5x4xf32, #tpu.memory_space<smem>>
    %250 = vector.broadcast %249 : f32 to vector<8x128xf32>
    %251 = arith.mulf %237, %250 : vector<8x128xf32>
    %252 = arith.addf %248, %251 : vector<8x128xf32>
    %c0_171 = arith.constant 0 : index
    %253 = memref.load %arg7[%c0_171] : memref<5xf32, #tpu.memory_space<smem>>
    %254 = vector.broadcast %253 : f32 to vector<8x128xf32>
    %255 = arith.addf %252, %254 : vector<8x128xf32>
    %cst_172 = arith.constant 0.000000e+00 : f32
    %256 = vector.broadcast %cst_172 : f32 to vector<8x128xf32>
    %257 = arith.maximumf %255, %256 : vector<8x128xf32>
    %c1_173 = arith.constant 1 : index
    %c0_174 = arith.constant 0 : index
    %258 = memref.load %arg6[%c1_173, %c0_174] : memref<5x4xf32, #tpu.memory_space<smem>>
    %259 = vector.broadcast %258 : f32 to vector<8x128xf32>
    %260 = arith.mulf %189, %259 : vector<8x128xf32>
    %c1_175 = arith.constant 1 : index
    %c1_176 = arith.constant 1 : index
    %261 = memref.load %arg6[%c1_175, %c1_176] : memref<5x4xf32, #tpu.memory_space<smem>>
    %262 = vector.broadcast %261 : f32 to vector<8x128xf32>
    %263 = arith.mulf %205, %262 : vector<8x128xf32>
    %264 = arith.addf %260, %263 : vector<8x128xf32>
    %c1_177 = arith.constant 1 : index
    %c2_178 = arith.constant 2 : index
    %265 = memref.load %arg6[%c1_177, %c2_178] : memref<5x4xf32, #tpu.memory_space<smem>>
    %266 = vector.broadcast %265 : f32 to vector<8x128xf32>
    %267 = arith.mulf %221, %266 : vector<8x128xf32>
    %268 = arith.addf %264, %267 : vector<8x128xf32>
    %c1_179 = arith.constant 1 : index
    %c3_180 = arith.constant 3 : index
    %269 = memref.load %arg6[%c1_179, %c3_180] : memref<5x4xf32, #tpu.memory_space<smem>>
    %270 = vector.broadcast %269 : f32 to vector<8x128xf32>
    %271 = arith.mulf %237, %270 : vector<8x128xf32>
    %272 = arith.addf %268, %271 : vector<8x128xf32>
    %c1_181 = arith.constant 1 : index
    %273 = memref.load %arg7[%c1_181] : memref<5xf32, #tpu.memory_space<smem>>
    %274 = vector.broadcast %273 : f32 to vector<8x128xf32>
    %275 = arith.addf %272, %274 : vector<8x128xf32>
    %cst_182 = arith.constant 0.000000e+00 : f32
    %276 = vector.broadcast %cst_182 : f32 to vector<8x128xf32>
    %277 = arith.maximumf %275, %276 : vector<8x128xf32>
    %c2_183 = arith.constant 2 : index
    %c0_184 = arith.constant 0 : index
    %278 = memref.load %arg6[%c2_183, %c0_184] : memref<5x4xf32, #tpu.memory_space<smem>>
    %279 = vector.broadcast %278 : f32 to vector<8x128xf32>
    %280 = arith.mulf %189, %279 : vector<8x128xf32>
    %c2_185 = arith.constant 2 : index
    %c1_186 = arith.constant 1 : index
    %281 = memref.load %arg6[%c2_185, %c1_186] : memref<5x4xf32, #tpu.memory_space<smem>>
    %282 = vector.broadcast %281 : f32 to vector<8x128xf32>
    %283 = arith.mulf %205, %282 : vector<8x128xf32>
    %284 = arith.addf %280, %283 : vector<8x128xf32>
    %c2_187 = arith.constant 2 : index
    %c2_188 = arith.constant 2 : index
    %285 = memref.load %arg6[%c2_187, %c2_188] : memref<5x4xf32, #tpu.memory_space<smem>>
    %286 = vector.broadcast %285 : f32 to vector<8x128xf32>
    %287 = arith.mulf %221, %286 : vector<8x128xf32>
    %288 = arith.addf %284, %287 : vector<8x128xf32>
    %c2_189 = arith.constant 2 : index
    %c3_190 = arith.constant 3 : index
    %289 = memref.load %arg6[%c2_189, %c3_190] : memref<5x4xf32, #tpu.memory_space<smem>>
    %290 = vector.broadcast %289 : f32 to vector<8x128xf32>
    %291 = arith.mulf %237, %290 : vector<8x128xf32>
    %292 = arith.addf %288, %291 : vector<8x128xf32>
    %c2_191 = arith.constant 2 : index
    %293 = memref.load %arg7[%c2_191] : memref<5xf32, #tpu.memory_space<smem>>
    %294 = vector.broadcast %293 : f32 to vector<8x128xf32>
    %295 = arith.addf %292, %294 : vector<8x128xf32>
    %cst_192 = arith.constant 0.000000e+00 : f32
    %296 = vector.broadcast %cst_192 : f32 to vector<8x128xf32>
    %297 = arith.maximumf %295, %296 : vector<8x128xf32>
    %c3_193 = arith.constant 3 : index
    %c0_194 = arith.constant 0 : index
    %298 = memref.load %arg6[%c3_193, %c0_194] : memref<5x4xf32, #tpu.memory_space<smem>>
    %299 = vector.broadcast %298 : f32 to vector<8x128xf32>
    %300 = arith.mulf %189, %299 : vector<8x128xf32>
    %c3_195 = arith.constant 3 : index
    %c1_196 = arith.constant 1 : index
    %301 = memref.load %arg6[%c3_195, %c1_196] : memref<5x4xf32, #tpu.memory_space<smem>>
    %302 = vector.broadcast %301 : f32 to vector<8x128xf32>
    %303 = arith.mulf %205, %302 : vector<8x128xf32>
    %304 = arith.addf %300, %303 : vector<8x128xf32>
    %c3_197 = arith.constant 3 : index
    %c2_198 = arith.constant 2 : index
    %305 = memref.load %arg6[%c3_197, %c2_198] : memref<5x4xf32, #tpu.memory_space<smem>>
    %306 = vector.broadcast %305 : f32 to vector<8x128xf32>
    %307 = arith.mulf %221, %306 : vector<8x128xf32>
    %308 = arith.addf %304, %307 : vector<8x128xf32>
    %c3_199 = arith.constant 3 : index
    %c3_200 = arith.constant 3 : index
    %309 = memref.load %arg6[%c3_199, %c3_200] : memref<5x4xf32, #tpu.memory_space<smem>>
    %310 = vector.broadcast %309 : f32 to vector<8x128xf32>
    %311 = arith.mulf %237, %310 : vector<8x128xf32>
    %312 = arith.addf %308, %311 : vector<8x128xf32>
    %c3_201 = arith.constant 3 : index
    %313 = memref.load %arg7[%c3_201] : memref<5xf32, #tpu.memory_space<smem>>
    %314 = vector.broadcast %313 : f32 to vector<8x128xf32>
    %315 = arith.addf %312, %314 : vector<8x128xf32>
    %cst_202 = arith.constant 0.000000e+00 : f32
    %316 = vector.broadcast %cst_202 : f32 to vector<8x128xf32>
    %317 = arith.maximumf %315, %316 : vector<8x128xf32>
    %c4_203 = arith.constant 4 : index
    %c0_204 = arith.constant 0 : index
    %318 = memref.load %arg6[%c4_203, %c0_204] : memref<5x4xf32, #tpu.memory_space<smem>>
    %319 = vector.broadcast %318 : f32 to vector<8x128xf32>
    %320 = arith.mulf %189, %319 : vector<8x128xf32>
    %c4_205 = arith.constant 4 : index
    %c1_206 = arith.constant 1 : index
    %321 = memref.load %arg6[%c4_205, %c1_206] : memref<5x4xf32, #tpu.memory_space<smem>>
    %322 = vector.broadcast %321 : f32 to vector<8x128xf32>
    %323 = arith.mulf %205, %322 : vector<8x128xf32>
    %324 = arith.addf %320, %323 : vector<8x128xf32>
    %c4_207 = arith.constant 4 : index
    %c2_208 = arith.constant 2 : index
    %325 = memref.load %arg6[%c4_207, %c2_208] : memref<5x4xf32, #tpu.memory_space<smem>>
    %326 = vector.broadcast %325 : f32 to vector<8x128xf32>
    %327 = arith.mulf %221, %326 : vector<8x128xf32>
    %328 = arith.addf %324, %327 : vector<8x128xf32>
    %c4_209 = arith.constant 4 : index
    %c3_210 = arith.constant 3 : index
    %329 = memref.load %arg6[%c4_209, %c3_210] : memref<5x4xf32, #tpu.memory_space<smem>>
    %330 = vector.broadcast %329 : f32 to vector<8x128xf32>
    %331 = arith.mulf %237, %330 : vector<8x128xf32>
    %332 = arith.addf %328, %331 : vector<8x128xf32>
    %c4_211 = arith.constant 4 : index
    %333 = memref.load %arg7[%c4_211] : memref<5xf32, #tpu.memory_space<smem>>
    %334 = vector.broadcast %333 : f32 to vector<8x128xf32>
    %335 = arith.addf %332, %334 : vector<8x128xf32>
    %cst_212 = arith.constant 0.000000e+00 : f32
    %336 = vector.broadcast %cst_212 : f32 to vector<8x128xf32>
    %337 = arith.maximumf %335, %336 : vector<8x128xf32>
    %c0_213 = arith.constant 0 : index
    %c0_214 = arith.constant 0 : index
    %c0_215 = arith.constant 0 : index
    %338 = vector.load %arg8[%c0_213, %c0_214, %c0_215] : memref<5x8x128xf32, #tpu.memory_space<vmem>>, vector<1x8x128xf32>
    %339 = vector.shape_cast %338 : vector<1x8x128xf32> to vector<8x128xf32>
    %340 = vector.shape_cast %257 : vector<8x128xf32> to vector<1x8x128xf32>
    tpu.vector_store %arg8[%c0_213, %c0_214, %c0_215], %340 {strides = array<i32>} : memref<5x8x128xf32, #tpu.memory_space<vmem>>, vector<1x8x128xf32>,
    %c1_216 = arith.constant 1 : index
    %c0_217 = arith.constant 0 : index
    %c0_218 = arith.constant 0 : index
    %341 = vector.load %arg8[%c1_216, %c0_217, %c0_218] : memref<5x8x128xf32, #tpu.memory_space<vmem>>, vector<1x8x128xf32>
    %342 = vector.shape_cast %341 : vector<1x8x128xf32> to vector<8x128xf32>
    %343 = vector.shape_cast %277 : vector<8x128xf32> to vector<1x8x128xf32>
    tpu.vector_store %arg8[%c1_216, %c0_217, %c0_218], %343 {strides = array<i32>} : memref<5x8x128xf32, #tpu.memory_space<vmem>>, vector<1x8x128xf32>,
    %c2_219 = arith.constant 2 : index
    %c0_220 = arith.constant 0 : index
    %c0_221 = arith.constant 0 : index
    %344 = vector.load %arg8[%c2_219, %c0_220, %c0_221] : memref<5x8x128xf32, #tpu.memory_space<vmem>>, vector<1x8x128xf32>
    %345 = vector.shape_cast %344 : vector<1x8x128xf32> to vector<8x128xf32>
    %346 = vector.shape_cast %297 : vector<8x128xf32> to vector<1x8x128xf32>
    tpu.vector_store %arg8[%c2_219, %c0_220, %c0_221], %346 {strides = array<i32>} : memref<5x8x128xf32, #tpu.memory_space<vmem>>, vector<1x8x128xf32>,
    %c3_222 = arith.constant 3 : index
    %c0_223 = arith.constant 0 : index
    %c0_224 = arith.constant 0 : index
    %347 = vector.load %arg8[%c3_222, %c0_223, %c0_224] : memref<5x8x128xf32, #tpu.memory_space<vmem>>, vector<1x8x128xf32>
    %348 = vector.shape_cast %347 : vector<1x8x128xf32> to vector<8x128xf32>
    %349 = vector.shape_cast %317 : vector<8x128xf32> to vector<1x8x128xf32>
    tpu.vector_store %arg8[%c3_222, %c0_223, %c0_224], %349 {strides = array<i32>} : memref<5x8x128xf32, #tpu.memory_space<vmem>>, vector<1x8x128xf32>,
    %c4_225 = arith.constant 4 : index
    %c0_226 = arith.constant 0 : index
    %c0_227 = arith.constant 0 : index
    %350 = vector.load %arg8[%c4_225, %c0_226, %c0_227] : memref<5x8x128xf32, #tpu.memory_space<vmem>>, vector<1x8x128xf32>
    %351 = vector.shape_cast %350 : vector<1x8x128xf32> to vector<8x128xf32>
    %352 = vector.shape_cast %337 : vector<8x128xf32> to vector<1x8x128xf32>
    tpu.vector_store %arg8[%c4_225, %c0_226, %c0_227], %352 {strides = array<i32>} : memref<5x8x128xf32, #tpu.memory_space<vmem>>, vector<1x8x128xf32>,
    return
  }
  func.func @transform_0(%arg0: i32) -> (i32, i32, i32) {
    %c0_i32 = arith.constant 0 : i32
    %c0_i32_0 = arith.constant 0 : i32
    %c0_i32_1 = arith.constant 0 : i32
    return %c0_i32, %arg0, %c0_i32_0 : i32, i32, i32
  }
  func.func @transform_1(%arg0: i32) -> (i32, i32) {
    %c0_i32 = arith.constant 0 : i32
    %c0_i32_0 = arith.constant 0 : i32
    %c0_i32_1 = arith.constant 0 : i32
    return %c0_i32, %c0_i32_0 : i32, i32
  }
  func.func @transform_2(%arg0: i32) -> i32 {
    %c0_i32 = arith.constant 0 : i32
    %c0_i32_0 = arith.constant 0 : i32
    return %c0_i32 : i32
  }
  func.func @transform_3(%arg0: i32) -> (i32, i32) {
    %c0_i32 = arith.constant 0 : i32
    %c0_i32_0 = arith.constant 0 : i32
    %c0_i32_1 = arith.constant 0 : i32
    return %c0_i32, %c0_i32_0 : i32, i32
  }
  func.func @transform_4(%arg0: i32) -> i32 {
    %c0_i32 = arith.constant 0 : i32
    %c0_i32_0 = arith.constant 0 : i32
    return %c0_i32 : i32
  }
  func.func @transform_5(%arg0: i32) -> (i32, i32) {
    %c0_i32 = arith.constant 0 : i32
    %c0_i32_0 = arith.constant 0 : i32
    %c0_i32_1 = arith.constant 0 : i32
    return %c0_i32, %c0_i32_0 : i32, i32
  }
  func.func @transform_6(%arg0: i32) -> i32 {
    %c0_i32 = arith.constant 0 : i32
    %c0_i32_0 = arith.constant 0 : i32
    return %c0_i32 : i32
  }
  func.func @transform_7(%arg0: i32) -> (i32, i32, i32) {
    %c0_i32 = arith.constant 0 : i32
    %c0_i32_0 = arith.constant 0 : i32
    %c0_i32_1 = arith.constant 0 : i32
    return %c0_i32, %arg0, %c0_i32_0 : i32, i32, i32
  }
}

</mosaic_0001>

<llo_original>
// kernel: fcnet_forward.1
$region0: #{fcnet_forward.1}
  #allocation0 [shape = 'u32[]', space=smem, size = 0x4, offset = 0x4, fixed_abs, tag = 'smem constant byte address 0x4 - core index']
  #allocation1 [shape = 'u32[144,128]{1,0:T(1,128)}', space=vmem, size = 0x12000, scoped, tag = 'internal scratch']
  %s0 = inlined_call_operand.vmem [shape: f32[9,8,128], index: 0, kind: input, shape index: {}]
  %s1 = inlined_call_operand.vmem [shape: f32[3,9], index: 1, kind: input, shape index: {}]
  %s2 = inlined_call_operand.vmem [shape: f32[3], index: 2, kind: input, shape index: {}]
  %s3 = inlined_call_operand.vmem [shape: f32[4,3], index: 3, kind: input, shape index: {}]
  %s4 = inlined_call_operand.vmem [shape: f32[4], index: 4, kind: input, shape index: {}]
  %s5 = inlined_call_operand.vmem [shape: f32[5,4], index: 5, kind: input, shape index: {}]
  %s6 = inlined_call_operand.vmem [shape: f32[5], index: 6, kind: input, shape index: {}]
  %s7 = inlined_call_operand.vmem [shape: f32[5,8,128], index: 7, kind: output, shape index: {}]
  %s8 = sld [smem:[#allocation0]]
  $region62: #{fcnet_forward.1} parent=0
    _
  %s10 = ssub.s32 1, %s8
  %s11 = scalar_select 0, %s10, %s8
  $region1: #{fcnet_forward.1} parent=0
    #allocation2 [shape = 'u8[2048]{0}', space=smem, size = 0x800, scoped, tag = 'input window, operand 1, single buffered']
    #allocation3 [shape = 's32[1]{0}', space=sflag, size = 0x4, scoped, tag = 'scoped memory for fcnet_forward.1']
    #allocation4 [shape = 'u8[512]{0}', space=smem, size = 0x200, scoped, tag = 'input window, operand 2, single buffered']
    #allocation5 [shape = 's32[1]{0}', space=sflag, size = 0x4, scoped, tag = 'scoped memory for fcnet_forward.1']
    #allocation6 [shape = 'u8[2048]{0}', space=smem, size = 0x800, scoped, tag = 'input window, operand 3, single buffered']
    #allocation7 [shape = 'u8[512]{0}', space=smem, size = 0x200, scoped, tag = 'input window, operand 4, single buffered']
    #allocation8 [shape = 's32[1]{0}', space=sflag, size = 0x4, scoped, tag = 'scoped memory for fcnet_forward.1']
    #allocation9 [shape = 'u8[4096]{0}', space=smem, size = 0x1000, scoped, tag = 'input window, operand 5, single buffered']
    #allocation10 [shape = 'u8[512]{0}', space=smem, size = 0x200, scoped, tag = 'input window, operand 6, single buffered']
    #allocation11 [shape = 's32[1]{0}', space=sflag, size = 0x4, scoped, tag = 'scoped memory for fcnet_forward.1']
    %12 = vsyncpa [#allocation3], 0
    %13 = vsyncpa [#allocation5], 0
    %14 = vsyncpa [#allocation8], 0
    %15 = vsyncpa [#allocation11], 0
    // Predicated region
    $region2: #{fcnet_forward.1} parent=1 // pred_check
      _
    $region3: #{fcnet_forward.1} parent=1 // pred_check_branch
      %17 = sbr.rel (0) target = $region5
    $region4: #{fcnet_forward.1} parent=1 // pred_region
      _
    $region5: #{fcnet_forward.1} parent=1 // pred_fallthru
      _
    // Predicated region
    $region6: #{fcnet_forward.1} parent=1 // pred_check
      _
    $region7: #{fcnet_forward.1} parent=1 // pred_check_branch
      %19 = sbr.rel (0) target = $region9
    $region8: #{fcnet_forward.1} parent=1 // pred_region
      %s21 = ssub.s32 64, 64
      %22 = vsyncadd [#allocation3], %s21
      %s24 = sshll.u32 %s1, 4
      %s25 = int_to_ptr.vmem [resolvable:$true] %s24
      %27 = dma.vmem_to_smem %s25, 64, [#allocation2], [#allocation3]
    $region9: #{fcnet_forward.1} parent=1 // pred_fallthru
      _
    // Predicated region
    $region10: #{fcnet_forward.1} parent=1 // pred_check
      _
    $region11: #{fcnet_forward.1} parent=1 // pred_check_branch
      %29 = sbr.rel (0) target = $region13
    $region12: #{fcnet_forward.1} parent=1 // pred_region
      %s31 = ssub.s32 16, 16
      %32 = vsyncadd [#allocation5], %s31
      %s34 = sshll.u32 %s2, 4
      %s35 = int_to_ptr.vmem [resolvable:$true] %s34
      %37 = dma.vmem_to_smem %s35, 16, [#allocation4], [#allocation5]
    $region13: #{fcnet_forward.1} parent=1 // pred_fallthru
      _
    // Predicated region
    $region14: #{fcnet_forward.1} parent=1 // pred_check
      _
    $region15: #{fcnet_forward.1} parent=1 // pred_check_branch
      %39 = sbr.rel (0) target = $region17
    $region16: #{fcnet_forward.1} parent=1 // pred_region
      %s41 = ssub.s32 64, 64
      %42 = vsyncadd [#allocation5], %s41
      %s44 = sshll.u32 %s3, 4
      %s45 = int_to_ptr.vmem [resolvable:$true] %s44
      %47 = dma.vmem_to_smem %s45, 64, [#allocation6], [#allocation5]
    $region17: #{fcnet_forward.1} parent=1 // pred_fallthru
      _
    // Predicated region
    $region18: #{fcnet_forward.1} parent=1 // pred_check
      _
    $region19: #{fcnet_forward.1} parent=1 // pred_check_branch
      %49 = sbr.rel (0) target = $region21
    $region20: #{fcnet_forward.1} parent=1 // pred_region
      %s51 = ssub.s32 16, 16
      %52 = vsyncadd [#allocation8], %s51
      %s54 = sshll.u32 %s4, 4
      %s55 = int_to_ptr.vmem [resolvable:$true] %s54
      %57 = dma.vmem_to_smem %s55, 16, [#allocation7], [#allocation8]
    $region21: #{fcnet_forward.1} parent=1 // pred_fallthru
      _
    // Predicated region
    $region22: #{fcnet_forward.1} parent=1 // pred_check
      _
    $region23: #{fcnet_forward.1} parent=1 // pred_check_branch
      %59 = sbr.rel (0) target = $region25
    $region24: #{fcnet_forward.1} parent=1 // pred_region
      %s61 = ssub.s32 128, 128
      %62 = vsyncadd [#allocation8], %s61
      %s64 = sshll.u32 %s5, 4
      %s65 = int_to_ptr.vmem [resolvable:$true] %s64
      %67 = dma.vmem_to_smem %s65, 128, [#allocation9], [#allocation8]
    $region25: #{fcnet_forward.1} parent=1 // pred_fallthru
      _
    // Predicated region
    $region26: #{fcnet_forward.1} parent=1 // pred_check
      _
    $region27: #{fcnet_forward.1} parent=1 // pred_check_branch
      %69 = sbr.rel (0) target = $region29
    $region28: #{fcnet_forward.1} parent=1 // pred_region
      %s71 = ssub.s32 16, 16
      %72 = vsyncadd [#allocation11], %s71
      %s74 = sshll.u32 %s6, 4
      %s75 = int_to_ptr.vmem [resolvable:$true] %s74
      %77 = dma.vmem_to_smem %s75, 16, [#allocation10], [#allocation11]
    $region29: #{fcnet_forward.1} parent=1 // pred_fallthru
      _
    // Predicated region
    $region30: #{fcnet_forward.1} parent=1 // pred_check
      _
    $region31: #{fcnet_forward.1} parent=1 // pred_check_branch
      %79 = sbr.rel (0) target = $region33
    $region32: #{fcnet_forward.1} parent=1 // pred_region
      %80 = dma.done [#allocation3], 64
    $region33: #{fcnet_forward.1} parent=1 // pred_fallthru
      _
    // Predicated region
    $region34: #{fcnet_forward.1} parent=1 // pred_check
      _
    $region35: #{fcnet_forward.1} parent=1 // pred_check_branch
      %82 = sbr.rel (0) target = $region37
    $region36: #{fcnet_forward.1} parent=1 // pred_region
      %83 = dma.done [#allocation5], 16
    $region37: #{fcnet_forward.1} parent=1 // pred_fallthru
      _
    // Predicated region
    $region38: #{fcnet_forward.1} parent=1 // pred_check
      _
    $region39: #{fcnet_forward.1} parent=1 // pred_check_branch
      %85 = sbr.rel (0) target = $region41
    $region40: #{fcnet_forward.1} parent=1 // pred_region
      %86 = dma.done [#allocation5], 64
    $region41: #{fcnet_forward.1} parent=1 // pred_fallthru
      _
    // Predicated region
    $region42: #{fcnet_forward.1} parent=1 // pred_check
      _
    $region43: #{fcnet_forward.1} parent=1 // pred_check_branch
      %88 = sbr.rel (0) target = $region45
    $region44: #{fcnet_forward.1} parent=1 // pred_region
      %89 = dma.done [#allocation8], 16
    $region45: #{fcnet_forward.1} parent=1 // pred_fallthru
      _
    // Predicated region
    $region46: #{fcnet_forward.1} parent=1 // pred_check
      _
    $region47: #{fcnet_forward.1} parent=1 // pred_check_branch
      %91 = sbr.rel (0) target = $region49
    $region48: #{fcnet_forward.1} parent=1 // pred_region
      %92 = dma.done [#allocation8], 128
    $region49: #{fcnet_forward.1} parent=1 // pred_fallthru
      _
    // Predicated region
    $region50: #{fcnet_forward.1} parent=1 // pred_check
      _
    $region51: #{fcnet_forward.1} parent=1 // pred_check_branch
      %94 = sbr.rel (0) target = $region53
    $region52: #{fcnet_forward.1} parent=1 // pred_region
      %95 = dma.done [#allocation11], 16
    $region53: #{fcnet_forward.1} parent=1 // pred_fallthru
      _
    %96 = sfence
    %v97 = vld [vmem:[%s0] sm:$0xff]
    %s98 = sld [smem:[#allocation2]]
    %v99 = vstv %s98
    %v100 = vmul.f32 %v97, %v99
    %s101 = scalar_lea.vmem %s0, 8
    %v102 = vld [vmem:[%s101] sm:$0xff]
    %s103 = sld [smem:[#allocation2 + $0x1]]
    %v104 = vstv %s103
    %v105 = vmul.f32 %v102, %v104
    %v106 = vadd.f32 %v100, %v105
    %s107 = scalar_lea.vmem %s0, 16
    %v108 = vld [vmem:[%s107] sm:$0xff]
    %s109 = sld [smem:[#allocation2 + $0x2]]
    %v110 = vstv %s109
    %v111 = vmul.f32 %v108, %v110
    %v112 = vadd.f32 %v106, %v111
    %s113 = scalar_lea.vmem %s0, 24
    %v114 = vld [vmem:[%s113] sm:$0xff]
    %s115 = sld [smem:[#allocation2 + $0x3]]
    %v116 = vstv %s115
    %v117 = vmul.f32 %v114, %v116
    %v118 = vadd.f32 %v112, %v117
    %s119 = scalar_lea.vmem %s0, 32
    %v120 = vld [vmem:[%s119] sm:$0xff]
    %s121 = sld [smem:[#allocation2 + $0x4]]
    %v122 = vstv %s121
    %v123 = vmul.f32 %v120, %v122
    %v124 = vadd.f32 %v118, %v123
    %s125 = scalar_lea.vmem %s0, 40
    %v126 = vld [vmem:[%s125] sm:$0xff]
    %s127 = sld [smem:[#allocation2 + $0x5]]
    %v128 = vstv %s127
    %v129 = vmul.f32 %v126, %v128
    %v130 = vadd.f32 %v124, %v129
    %s131 = scalar_lea.vmem %s0, 48
    %v132 = vld [vmem:[%s131] sm:$0xff]
    %s133 = sld [smem:[#allocation2 + $0x6]]
    %v134 = vstv %s133
    %v135 = vmul.f32 %v132, %v134
    %v136 = vadd.f32 %v130, %v135
    %s137 = scalar_lea.vmem %s0, 56
    %v138 = vld [vmem:[%s137] sm:$0xff]
    %s139 = sld [smem:[#allocation2 + $0x7]]
    %v140 = vstv %s139
    %v141 = vmul.f32 %v138, %v140
    %v142 = vadd.f32 %v136, %v141
    %s143 = scalar_lea.vmem %s0, 64
    %v144 = vld [vmem:[%s143] sm:$0xff]
    %s145 = sld [smem:[#allocation2 + $0x8]]
    %v146 = vstv %s145
    %v147 = vmul.f32 %v144, %v146
    %v148 = vadd.f32 %v142, %v147
    %s149 = sld [smem:[#allocation4]]
    %v150 = vstv %s149
    %v151 = vadd.f32 %v148, %v150
    %v152 = vmax.f32 %v151, 0.0
    %s153 = sld [smem:[#allocation2 + $0x80]]
    %v154 = vstv %s153
    %v155 = vmul.f32 %v97, %v154
    %s156 = sld [smem:[#allocation2 + $0x81]]
    %v157 = vstv %s156
    %v158 = vmul.f32 %v102, %v157
    %v159 = vadd.f32 %v155, %v158
    %s160 = sld [smem:[#allocation2 + $0x82]]
    %v161 = vstv %s160
    %v162 = vmul.f32 %v108, %v161
    %v163 = vadd.f32 %v159, %v162
    %s164 = sld [smem:[#allocation2 + $0x83]]
    %v165 = vstv %s164
    %v166 = vmul.f32 %v114, %v165
    %v167 = vadd.f32 %v163, %v166
    %s168 = sld [smem:[#allocation2 + $0x84]]
    %v169 = vstv %s168
    %v170 = vmul.f32 %v120, %v169
    %v171 = vadd.f32 %v167, %v170
    %s172 = sld [smem:[#allocation2 + $0x85]]
    %v173 = vstv %s172
    %v174 = vmul.f32 %v126, %v173
    %v175 = vadd.f32 %v171, %v174
    %s176 = sld [smem:[#allocation2 + $0x86]]
    %v177 = vstv %s176
    %v178 = vmul.f32 %v132, %v177
    %v179 = vadd.f32 %v175, %v178
    %s180 = sld [smem:[#allocation2 + $0x87]]
    %v181 = vstv %s180
    %v182 = vmul.f32 %v138, %v181
    %v183 = vadd.f32 %v179, %v182
    %s184 = sld [smem:[#allocation2 + $0x88]]
    %v185 = vstv %s184
    %v186 = vmul.f32 %v144, %v185
    %v187 = vadd.f32 %v183, %v186
    %s188 = sld [smem:[#allocation4 + $0x1]]
    %v189 = vstv %s188
    %v190 = vadd.f32 %v187, %v189
    %v191 = vmax.f32 %v190, 0.0
    %s192 = sld [smem:[#allocation2 + $0x100]]
    %v193 = vstv %s192
    %v194 = vmul.f32 %v97, %v193
    %s195 = sld [smem:[#allocation2 + $0x101]]
    %v196 = vstv %s195
    %v197 = vmul.f32 %v102, %v196
    %v198 = vadd.f32 %v194, %v197
    %s199 = sld [smem:[#allocation2 + $0x102]]
    %v200 = vstv %s199
    %v201 = vmul.f32 %v108, %v200
    %v202 = vadd.f32 %v198, %v201
    %s203 = sld [smem:[#allocation2 + $0x103]]
    %v204 = vstv %s203
    %v205 = vmul.f32 %v114, %v204
    %v206 = vadd.f32 %v202, %v205
    %s207 = sld [smem:[#allocation2 + $0x104]]
    %v208 = vstv %s207
    %v209 = vmul.f32 %v120, %v208
    %v210 = vadd.f32 %v206, %v209
    %s211 = sld [smem:[#allocation2 + $0x105]]
    %v212 = vstv %s211
    %v213 = vmul.f32 %v126, %v212
    %v214 = vadd.f32 %v210, %v213
    %s215 = sld [smem:[#allocation2 + $0x106]]
    %v216 = vstv %s215
    %v217 = vmul.f32 %v132, %v216
    %v218 = vadd.f32 %v214, %v217
    %s219 = sld [smem:[#allocation2 + $0x107]]
    %v220 = vstv %s219
    %v221 = vmul.f32 %v138, %v220
    %v222 = vadd.f32 %v218, %v221
    %s223 = sld [smem:[#allocation2 + $0x108]]
    %v224 = vstv %s223
    %v225 = vmul.f32 %v144, %v224
    %v226 = vadd.f32 %v222, %v225
    %s227 = sld [smem:[#allocation4 + $0x2]]
    %v228 = vstv %s227
    %v229 = vadd.f32 %v226, %v228
    %v230 = vmax.f32 %v229, 0.0
    %s231 = sld [smem:[#allocation6]]
    %v232 = vstv %s231
    %v233 = vmul.f32 %v152, %v232
    %s234 = sld [smem:[#allocation6 + $0x1]]
    %v235 = vstv %s234
    %v236 = vmul.f32 %v191, %v235
    %v237 = vadd.f32 %v233, %v236
    %s238 = sld [smem:[#allocation6 + $0x2]]
    %v239 = vstv %s238
    %v240 = vmul.f32 %v230, %v239
    %v241 = vadd.f32 %v237, %v240
    %s242 = sld [smem:[#allocation7]]
    %v243 = vstv %s242
    %v244 = vadd.f32 %v241, %v243
    %v245 = vmax.f32 %v244, 0.0
    %s246 = sld [smem:[#allocation6 + $0x80]]
    %v247 = vstv %s246
    %v248 = vmul.f32 %v152, %v247
    %s249 = sld [smem:[#allocation6 + $0x81]]
    %v250 = vstv %s249
    %v251 = vmul.f32 %v191, %v250
    %v252 = vadd.f32 %v248, %v251
    %s253 = sld [smem:[#allocation6 + $0x82]]
    %v254 = vstv %s253
    %v255 = vmul.f32 %v230, %v254
    %v256 = vadd.f32 %v252, %v255
    %s257 = sld [smem:[#allocation7 + $0x1]]
    %v258 = vstv %s257
    %v259 = vadd.f32 %v256, %v258
    %v260 = vmax.f32 %v259, 0.0
    %s261 = sld [smem:[#allocation6 + $0x100]]
    %v262 = vstv %s261
    %v263 = vmul.f32 %v152, %v262
    %s264 = sld [smem:[#allocation6 + $0x101]]
    %v265 = vstv %s264
    %v266 = vmul.f32 %v191, %v265
    %v267 = vadd.f32 %v263, %v266
    %s268 = sld [smem:[#allocation6 + $0x102]]
    %v269 = vstv %s268
    %v270 = vmul.f32 %v230, %v269
    %v271 = vadd.f32 %v267, %v270
    %s272 = sld [smem:[#allocation7 + $0x2]]
    %v273 = vstv %s272
    %v274 = vadd.f32 %v271, %v273
    %v275 = vmax.f32 %v274, 0.0
    %s276 = sld [smem:[#allocation6 + $0x180]]
    %v277 = vstv %s276
    %v278 = vmul.f32 %v152, %v277
    %s279 = sld [smem:[#allocation6 + $0x181]]
    %v280 = vstv %s279
    %v281 = vmul.f32 %v191, %v280
    %v282 = vadd.f32 %v278, %v281
    %s283 = sld [smem:[#allocation6 + $0x182]]
    %v284 = vstv %s283
    %v285 = vmul.f32 %v230, %v284
    %v286 = vadd.f32 %v282, %v285
    %s287 = sld [smem:[#allocation7 + $0x3]]
    %v288 = vstv %s287
    %v289 = vadd.f32 %v286, %v288
    %v290 = vmax.f32 %v289, 0.0
    %s291 = sld [smem:[#allocation9]]
    %v292 = vstv %s291
    %v293 = vmul.f32 %v245, %v292
    %s294 = sld [smem:[#allocation9 + $0x1]]
    %v295 = vstv %s294
    %v296 = vmul.f32 %v260, %v295
    %v297 = vadd.f32 %v293, %v296
    %s298 = sld [smem:[#allocation9 + $0x2]]
    %v299 = vstv %s298
    %v300 = vmul.f32 %v275, %v299
    %v301 = vadd.f32 %v297, %v300
    %s302 = sld [smem:[#allocation9 + $0x3]]
    %v303 = vstv %s302
    %v304 = vmul.f32 %v290, %v303
    %v305 = vadd.f32 %v301, %v304
    %s306 = sld [smem:[#allocation10]]
    %v307 = vstv %s306
    %v308 = vadd.f32 %v305, %v307
    %v309 = vmax.f32 %v308, 0.0
    %s310 = sld [smem:[#allocation9 + $0x80]]
    %v311 = vstv %s310
    %v312 = vmul.f32 %v245, %v311
    %s313 = sld [smem:[#allocation9 + $0x81]]
    %v314 = vstv %s313
    %v315 = vmul.f32 %v260, %v314
    %v316 = vadd.f32 %v312, %v315
    %s317 = sld [smem:[#allocation9 + $0x82]]
    %v318 = vstv %s317
    %v319 = vmul.f32 %v275, %v318
    %v320 = vadd.f32 %v316, %v319
    %s321 = sld [smem:[#allocation9 + $0x83]]
    %v322 = vstv %s321
    %v323 = vmul.f32 %v290, %v322
    %v324 = vadd.f32 %v320, %v323
    %s325 = sld [smem:[#allocation10 + $0x1]]
    %v326 = vstv %s325
    %v327 = vadd.f32 %v324, %v326
    %v328 = vmax.f32 %v327, 0.0
    %s329 = sld [smem:[#allocation9 + $0x100]]
    %v330 = vstv %s329
    %v331 = vmul.f32 %v245, %v330
    %s332 = sld [smem:[#allocation9 + $0x101]]
    %v333 = vstv %s332
    %v334 = vmul.f32 %v260, %v333
    %v335 = vadd.f32 %v331, %v334
    %s336 = sld [smem:[#allocation9 + $0x102]]
    %v337 = vstv %s336
    %v338 = vmul.f32 %v275, %v337
    %v339 = vadd.f32 %v335, %v338
    %s340 = sld [smem:[#allocation9 + $0x103]]
    %v341 = vstv %s340
    %v342 = vmul.f32 %v290, %v341
    %v343 = vadd.f32 %v339, %v342
    %s344 = sld [smem:[#allocation10 + $0x2]]
    %v345 = vstv %s344
    %v346 = vadd.f32 %v343, %v345
    %v347 = vmax.f32 %v346, 0.0
    %s348 = sld [smem:[#allocation9 + $0x180]]
    %v349 = vstv %s348
    %v350 = vmul.f32 %v245, %v349
    %s351 = sld [smem:[#allocation9 + $0x181]]
    %v352 = vstv %s351
    %v353 = vmul.f32 %v260, %v352
    %v354 = vadd.f32 %v350, %v353
    %s355 = sld [smem:[#allocation9 + $0x182]]
    %v356 = vstv %s355
    %v357 = vmul.f32 %v275, %v356
    %v358 = vadd.f32 %v354, %v357
    %s359 = sld [smem:[#allocation9 + $0x183]]
    %v360 = vstv %s359
    %v361 = vmul.f32 %v290, %v360
    %v362 = vadd.f32 %v358, %v361
    %s363 = sld [smem:[#allocation10 + $0x3]]
    %v364 = vstv %s363
    %v365 = vadd.f32 %v362, %v364
    %v366 = vmax.f32 %v365, 0.0
    %s367 = sld [smem:[#allocation9 + $0x200]]
    %v368 = vstv %s367
    %v369 = vmul.f32 %v245, %v368
    %s370 = sld [smem:[#allocation9 + $0x201]]
    %v371 = vstv %s370
    %v372 = vmul.f32 %v260, %v371
    %v373 = vadd.f32 %v369, %v372
    %s374 = sld [smem:[#allocation9 + $0x202]]
    %v375 = vstv %s374
    %v376 = vmul.f32 %v275, %v375
    %v377 = vadd.f32 %v373, %v376
    %s378 = sld [smem:[#allocation9 + $0x203]]
    %v379 = vstv %s378
    %v380 = vmul.f32 %v290, %v379
    %v381 = vadd.f32 %v377, %v380
    %s382 = sld [smem:[#allocation10 + $0x4]]
    %v383 = vstv %s382
    %v384 = vadd.f32 %v381, %v383
    %v385 = vmax.f32 %v384, 0.0
    %386 = vst [vmem:[%s7] sm:$0xff] %v309
    %s387 = scalar_lea.vmem %s7, 8
    %388 = vst [vmem:[%s387] sm:$0xff] %v328
    %s389 = scalar_lea.vmem %s7, 16
    %390 = vst [vmem:[%s389] sm:$0xff] %v347
    %s391 = scalar_lea.vmem %s7, 24
    %392 = vst [vmem:[%s391] sm:$0xff] %v366
    %s393 = scalar_lea.vmem %s7, 32
    %394 = vst [vmem:[%s393] sm:$0xff] %v385
    // Predicated region
    $region54: #{fcnet_forward.1} parent=1 // pred_check
      _
    $region55: #{fcnet_forward.1} parent=1 // pred_check_branch
      %396 = sbr.rel (0) target = $region57
    $region56: #{fcnet_forward.1} parent=1 // pred_region
      _
    $region57: #{fcnet_forward.1} parent=1 // pred_fallthru
      _
    // Predicated region
    $region58: #{fcnet_forward.1} parent=1 // pred_check
      _
    $region59: #{fcnet_forward.1} parent=1 // pred_check_branch
      %398 = sbr.rel (0) target = $region61
    $region60: #{fcnet_forward.1} parent=1 // pred_region
      _
    $region61: #{fcnet_forward.1} parent=1 // pred_fallthru
      _
    %399 = vsyncpa [#allocation3], 1
    %400 = vsyncpa [#allocation5], 1
    %401 = vsyncpa [#allocation8], 1
    %402 = vsyncpa [#allocation11], 1

</llo_original>
